<compile_context>
chip_gen: v7x
topology: tpu7x:2x2x1
jax: 0.10.0
libtpu: 0.0.40
codegen_flags: <defaults>
</compile_context>

<pallas_src>
import jax
import jax.numpy as jnp
from jax.experimental import pallas as pl
from jax.experimental.pallas import tpu as pltpu
import numpy as np


# System matrices from the reference script (deterministic parameters).
A_NP = np.array([[2.0, -3.0], [0.04, -0.01]], dtype=np.float32)
B_NP = np.array([[10.0, -3.0], [0.0, 3.0]], dtype=np.float32)

_LANE = 128
_SUBLANE = 8
_DEFAULT_MAX_TILE_LANES = 131072   # lanes per grid step (~2 MiB input block)
_MIN_GRID_STEPS = 2                # keep >=2 steps so both v7x TCs get work
_SMALL_BATCH_THRESHOLD = 2048      # below this, plain fused jnp wins


def _round_up(n, m):
    return ((n + m - 1) // m) * m


def _make_dynamics_kernel(A, B):
    """Kernel with the 2x2 A/B baked in as scalar constants (pure VPU FMAs)."""
    a00, a01 = float(A[0, 0]), float(A[0, 1])
    a10, a11 = float(A[1, 0]), float(A[1, 1])
    b00, b01 = float(B[0, 0]), float(B[0, 1])
    b10, b11 = float(B[1, 0]), float(B[1, 1])

    def kernel(xu_ref, o_ref):
        # xu_ref: (4, R, 128)  planes = [x_col0, x_col1, u_col0, u_col1]
        # o_ref : (2, R, 128)  planes = [out_col0, out_col1]
        x0 = xu_ref[0]
        x1 = xu_ref[1]
        u0 = xu_ref[2]
        u1 = xu_ref[3]
        # out^T = A^T @ x^T + B^T @ u^T, expanded as scalar-broadcast FMAs on
        # dense (R, 128) slabs (full 8x128 vregs).
        o_ref[0] = a00 * x0 + a10 * x1 + b00 * u0 + b10 * u1
        o_ref[1] = a01 * x0 + a11 * x1 + b01 * u0 + b11 * u1

    return kernel


def system_linear_dynamics(t, x, u, A=None, B=None,
                           max_tile_lanes=_DEFAULT_MAX_TILE_LANES,
                           use_pallas=None):
    """Pallas equivalent of the PyTorch module's forward(t, x, u).

    t is unused (signature parity). x: (batch, 2), u: (batch, 2).
    A/B must be concrete 2x2 matrices; they are baked into the kernel as
    compile-time constants (passing traced A/B is not supported).
    """
    del t  # unused, kept for signature parity
    A = A_NP if A is None else np.asarray(A, dtype=np.float32)
    B = B_NP if B is None else np.asarray(B, dtype=np.float32)
    assert A.shape == (2, 2) and B.shape == (2, 2)

    batch, n = x.shape
    assert n == 2 and u.shape == (batch, 2)

    if x.dtype != jnp.float32:
        x = x.astype(jnp.float32)
    if u.dtype != jnp.float32:
        u = u.astype(jnp.float32)

    if use_pallas is None:
        use_pallas = batch >= _SMALL_BATCH_THRESHOLD
    if not use_pallas:
        # Small-batch fast path: pallas_call launch + wrapper transposes are
        # pure fixed overhead vs nanoseconds of work; XLA's fused path wins.
        return x @ jnp.asarray(A) + u @ jnp.asarray(B)

    # SoA slab: (4, batch) with batch on the fast axis, padded to a multiple
    # of 128 lanes, then a free row-major reshape to (4, rows, 128) so batch
    # fills both the sublane and lane axes of every vreg.
    # TODO(synk): if the caller can keep state in SoA (2, batch) layout the
    # transpose/concat wrapper pass disappears entirely.
    xu_t = jnp.concatenate([x.T, u.T], axis=0)            # (4, batch)
    padded = _round_up(batch, _LANE)
    if padded != batch:
        xu_t = jnp.pad(xu_t, ((0, 0), (0, padded - batch)))
    total_rows = padded // _LANE
    xu3 = xu_t.reshape(4, total_rows, _LANE)

    # Rows per grid step: large enough to amortize per-step overhead, small
    # enough to double-buffer in default scoped VMEM on v5e, and capped so the
    # grid has >= _MIN_GRID_STEPS steps (keeps both v7x TensorCores busy).
    max_rows = max(_SUBLANE, (max_tile_lanes // _LANE) // _SUBLANE * _SUBLANE)
    if total_rows <= _SUBLANE:
        rows_per_block = total_rows               # single full-extent block
    else:
        target = _round_up(pl.cdiv(total_rows, _MIN_GRID_STEPS), _SUBLANE)
        rows_per_block = max(_SUBLANE, min(max_rows, target))
    grid = (pl.cdiv(total_rows, rows_per_block),)  # ragged last block is masked

    kernel = _make_dynamics_kernel(A, B)
    out3 = pl.pallas_call(
        kernel,
        out_shape=jax.ShapeDtypeStruct((2, total_rows, _LANE), jnp.float32),
        grid=grid,
        in_specs=[pl.BlockSpec((4, rows_per_block, _LANE), lambda i: (0, i, 0))],
        out_specs=pl.BlockSpec((2, rows_per_block, _LANE), lambda i: (0, i, 0)),
        compiler_params=pltpu.CompilerParams(
            dimension_semantics=("parallel",)),
        cost_estimate=pl.CostEstimate(
            flops=14 * padded, transcendentals=0, bytes_accessed=24 * padded),
    )(xu3)

    # Back to the reference AoS layout: (batch, 2).
    out_t = out3.reshape(2, padded)[:, :batch]
    return out_t.T


if __name__ == "__main__":
    A = jnp.asarray(A_NP)
    B = jnp.asarray(B_NP)
    t = jnp.float32(0.0)  # unused, matches forward(t, x, u) signature

    def ref_fn(x, u):
        return x @ A + u @ B

    # 1) Small batch (module's typical usage) -> fast path.
    kx, ku = jax.random.split(jax.random.PRNGKey(0))
    x = jax.random.normal(kx, (8, 2), dtype=jnp.float32)
    u = jax.random.normal(ku, (8, 2), dtype=jnp.float32)
    out = jax.block_until_ready(system_linear_dynamics(t, x, u))
    np.testing.assert_allclose(np.asarray(out), np.asarray(ref_fn(x, u)),
                               rtol=1e-5, atol=1e-5)

    # 2) Force the Pallas kernel at a non-multiple-of-128 batch (single block,
    #    full-extent sublane dim).
    kx2, ku2 = jax.random.split(jax.random.PRNGKey(1))
    x2 = jax.random.normal(kx2, (300, 2), dtype=jnp.float32)
    u2 = jax.random.normal(ku2, (300, 2), dtype=jnp.float32)
    out2 = jax.block_until_ready(
        system_linear_dynamics(t, x2, u2, use_pallas=True))
    np.testing.assert_allclose(np.asarray(out2), np.asarray(ref_fn(x2, u2)),
                               rtol=1e-5, atol=1e-5)

    # 3) Multi-step grid with a ragged last block (small tile forces 3 steps).
    kx3, ku3 = jax.random.split(jax.random.PRNGKey(2))
    x3 = jax.random.normal(kx3, (2500, 2), dtype=jnp.float32)
    u3 = jax.random.normal(ku3, (2500, 2), dtype=jnp.float32)
    out3 = jax.block_until_ready(
        system_linear_dynamics(t, x3, u3, use_pallas=True,
                               max_tile_lanes=1024))
    np.testing.assert_allclose(np.asarray(out3), np.asarray(ref_fn(x3, u3)),
                               rtol=1e-5, atol=1e-5)

    # 4) Default (auto) Pallas path at a batch above the threshold.
    kx4, ku4 = jax.random.split(jax.random.PRNGKey(3))
    x4 = jax.random.normal(kx4, (4096, 2), dtype=jnp.float32)
    u4 = jax.random.normal(ku4, (4096, 2), dtype=jnp.float32)
    out4 = jax.block_until_ready(system_linear_dynamics(t, x4, u4))
    np.testing.assert_allclose(np.asarray(out4), np.asarray(ref_fn(x4, u4)),
                               rtol=1e-5, atol=1e-5)

    print("KERNEL_OK")
</pallas_src>

<mosaic_0001>
module attributes {stable_mosaic.version = 11 : i64} {
  func.func @kernel(%arg0: i32, %arg1: memref<4x3x128xf32, #tpu.memory_space<vmem>>, %arg2: memref<2x3x128xf32, #tpu.memory_space<vmem>>) attributes {dimension_semantics = [#tpu.dimension_semantics<parallel>], iteration_bounds = array<i64: 1>, scalar_prefetch = 0 : i64, scratch_operands = 0 : i64, tpu.core_type = #tpu.core_type<tc>, window_params = [{transform_indices = @transform_0, window_bounds = array<i64: 4, 3, 128>}, {transform_indices = @transform_1, window_bounds = array<i64: 2, 3, 128>}]} {
    %c0 = arith.constant 0 : index
    %c0_0 = arith.constant 0 : index
    %c0_1 = arith.constant 0 : index
    %0 = vector.load %arg1[%c0, %c0_0, %c0_1] : memref<4x3x128xf32, #tpu.memory_space<vmem>>, vector<1x3x128xf32>
    %1 = vector.shape_cast %0 : vector<1x3x128xf32> to vector<3x128xf32>
    %c1 = arith.constant 1 : index
    %c0_2 = arith.constant 0 : index
    %c0_3 = arith.constant 0 : index
    %2 = vector.load %arg1[%c1, %c0_2, %c0_3] : memref<4x3x128xf32, #tpu.memory_space<vmem>>, vector<1x3x128xf32>
    %3 = vector.shape_cast %2 : vector<1x3x128xf32> to vector<3x128xf32>
    %c2 = arith.constant 2 : index
    %c0_4 = arith.constant 0 : index
    %c0_5 = arith.constant 0 : index
    %4 = vector.load %arg1[%c2, %c0_4, %c0_5] : memref<4x3x128xf32, #tpu.memory_space<vmem>>, vector<1x3x128xf32>
    %5 = vector.shape_cast %4 : vector<1x3x128xf32> to vector<3x128xf32>
    %c3 = arith.constant 3 : index
    %c0_6 = arith.constant 0 : index
    %c0_7 = arith.constant 0 : index
    %6 = vector.load %arg1[%c3, %c0_6, %c0_7] : memref<4x3x128xf32, #tpu.memory_space<vmem>>, vector<1x3x128xf32>
    %7 = vector.shape_cast %6 : vector<1x3x128xf32> to vector<3x128xf32>
    %cst = arith.constant 2.000000e+00 : f32
    %8 = vector.broadcast %cst : f32 to vector<3x128xf32>
    %9 = arith.mulf %8, %1 : vector<3x128xf32>
    %cst_8 = arith.constant 4.000000e-02 : f32
    %10 = vector.broadcast %cst_8 : f32 to vector<3x128xf32>
    %11 = arith.mulf %10, %3 : vector<3x128xf32>
    %12 = arith.addf %9, %11 : vector<3x128xf32>
    %cst_9 = arith.constant 1.000000e+01 : f32
    %13 = vector.broadcast %cst_9 : f32 to vector<3x128xf32>
    %14 = arith.mulf %13, %5 : vector<3x128xf32>
    %15 = arith.addf %12, %14 : vector<3x128xf32>
    %cst_10 = arith.constant 0.000000e+00 : f32
    %16 = vector.broadcast %cst_10 : f32 to vector<3x128xf32>
    %17 = arith.mulf %16, %7 : vector<3x128xf32>
    %18 = arith.addf %15, %17 : vector<3x128xf32>
    %c0_11 = arith.constant 0 : index
    %c0_12 = arith.constant 0 : index
    %c0_13 = arith.constant 0 : index
    %19 = vector.load %arg2[%c0_11, %c0_12, %c0_13] : memref<2x3x128xf32, #tpu.memory_space<vmem>>, vector<1x3x128xf32>
    %20 = vector.shape_cast %19 : vector<1x3x128xf32> to vector<3x128xf32>
    %21 = vector.shape_cast %18 : vector<3x128xf32> to vector<1x3x128xf32>
    tpu.vector_store %arg2[%c0_11, %c0_12, %c0_13], %21 {strides = array<i32>} : memref<2x3x128xf32, #tpu.memory_space<vmem>>, vector<1x3x128xf32>,
    %cst_14 = arith.constant -3.000000e+00 : f32
    %22 = vector.broadcast %cst_14 : f32 to vector<3x128xf32>
    %23 = arith.mulf %22, %1 : vector<3x128xf32>
    %cst_15 = arith.constant -0.00999999977 : f32
    %24 = vector.broadcast %cst_15 : f32 to vector<3x128xf32>
    %25 = arith.mulf %24, %3 : vector<3x128xf32>
    %26 = arith.addf %23, %25 : vector<3x128xf32>
    %cst_16 = arith.constant -3.000000e+00 : f32
    %27 = vector.broadcast %cst_16 : f32 to vector<3x128xf32>
    %28 = arith.mulf %27, %5 : vector<3x128xf32>
    %29 = arith.addf %26, %28 : vector<3x128xf32>
    %cst_17 = arith.constant 3.000000e+00 : f32
    %30 = vector.broadcast %cst_17 : f32 to vector<3x128xf32>
    %31 = arith.mulf %30, %7 : vector<3x128xf32>
    %32 = arith.addf %29, %31 : vector<3x128xf32>
    %c1_18 = arith.constant 1 : index
    %c0_19 = arith.constant 0 : index
    %c0_20 = arith.constant 0 : index
    %33 = vector.load %arg2[%c1_18, %c0_19, %c0_20] : memref<2x3x128xf32, #tpu.memory_space<vmem>>, vector<1x3x128xf32>
    %34 = vector.shape_cast %33 : vector<1x3x128xf32> to vector<3x128xf32>
    %35 = vector.shape_cast %32 : vector<3x128xf32> to vector<1x3x128xf32>
    tpu.vector_store %arg2[%c1_18, %c0_19, %c0_20], %35 {strides = array<i32>} : memref<2x3x128xf32, #tpu.memory_space<vmem>>, vector<1x3x128xf32>,
    return
  }
  func.func @transform_0(%arg0: i32) -> (i32, i32, i32) {
    %c0_i32 = arith.constant 0 : i32
    %c0_i32_0 = arith.constant 0 : i32
    %c0_i32_1 = arith.constant 0 : i32
    return %c0_i32, %arg0, %c0_i32_0 : i32, i32, i32
  }
  func.func @transform_1(%arg0: i32) -> (i32, i32, i32) {
    %c0_i32 = arith.constant 0 : i32
    %c0_i32_0 = arith.constant 0 : i32
    %c0_i32_1 = arith.constant 0 : i32
    return %c0_i32, %arg0, %c0_i32_0 : i32, i32, i32
  }
}

</mosaic_0001>

<llo_original>
// kernel: tpu_custom_call.1
$region0: #{tpu_custom_call.1}
  #allocation0 [shape = 'u32[]', space=smem, size = 0x4, offset = 0x4, fixed_abs, tag = 'smem constant byte address 0x4 - core index']
  #allocation1 [shape = 'u32[144,128]{1,0:T(1,128)}', space=vmem, size = 0x12000, scoped, tag = 'internal scratch']
  %s0 = inlined_call_operand.vmem [shape: f32[4,3,128], index: 0, kind: input, shape index: {}]
  %s1 = inlined_call_operand.vmem [shape: f32[2,3,128], index: 1, kind: output, shape index: {}]
  %s2 = sld [smem:[#allocation0]]
  $region14: #{tpu_custom_call.1} parent=0
    _
  %s4 = ssub.s32 1, %s2
  %s5 = scalar_select 0, %s4, %s2
  // Predicated region
  $region2: #{tpu_custom_call.1} parent=0 // pred_check
    _
  $region3: #{tpu_custom_call.1} parent=0 // pred_check_branch
    %7 = sbr.rel (0) target = $region5
  $region4: #{tpu_custom_call.1} parent=0 // pred_region
    _
  $region5: #{tpu_custom_call.1} parent=0 // pred_fallthru
    _
  %v8 = vld [vmem:[%s0] sm:$0x7]
  %s9 = scalar_lea.vmem %s0, 4
  %v10 = vld [vmem:[%s9] sm:$0x7]
  %s11 = scalar_lea.vmem %s0, 8
  %v12 = vld [vmem:[%s11] sm:$0x7]
  %s13 = scalar_lea.vmem %s0, 12
  %v14 = vld [vmem:[%s13] sm:$0x7]
  %v15 = vmul.f32 %v8, 2.0
  %v16 = vmul.f32 %v10, 0.04
  %v17 = vadd.f32 %v15, %v16
  %v18 = vmul.f32 %v12, 10.0
  %v19 = vadd.f32 %v17, %v18
  %v20 = vmul.f32 %v14, 0.0
  %v21 = vadd.f32 %v19, %v20
  %22 = vst [vmem:[%s1] sm:$0x7] %v21
  %v23 = vmul.f32 %v8, -3.0
  %v24 = vmul.f32 %v10, -0.01
  %v25 = vadd.f32 %v23, %v24
  %v26 = vmul.f32 %v12, -3.0
  %v27 = vadd.f32 %v25, %v26
  %v28 = vmul.f32 %v14, 3.0
  %v29 = vadd.f32 %v27, %v28
  %s30 = scalar_lea.vmem %s1, 4
  %31 = vst [vmem:[%s30] sm:$0x7] %v29
  // Predicated region
  $region6: #{tpu_custom_call.1} parent=0 // pred_check
    _
  $region7: #{tpu_custom_call.1} parent=0 // pred_check_branch
    %33 = sbr.rel (0) target = $region9
  $region8: #{tpu_custom_call.1} parent=0 // pred_region
    _
  $region9: #{tpu_custom_call.1} parent=0 // pred_fallthru
    _
  // Predicated region
  $region10: #{tpu_custom_call.1} parent=0 // pred_check
    _
  $region11: #{tpu_custom_call.1} parent=0 // pred_check_branch
    %35 = sbr.rel (0) target = $region13
  $region12: #{tpu_custom_call.1} parent=0 // pred_region
    _
  $region13: #{tpu_custom_call.1} parent=0 // pred_fallthru
    _

</llo_original>
